<compile_context>
chip_gen: v6e
topology: v6e:2x2x1
jax: 0.10.0
libtpu: 0.0.40
codegen_flags: <defaults>
</compile_context>

<pallas_src>
import math

import jax
import jax.numpy as jnp
from jax import lax
from jax.experimental import pallas as pl
from jax.experimental.pallas import tpu as pltpu


def _round_up(x, m):
    return (x + m - 1) // m * m


def _encoder_block_kernel(x_ref, w_ref, b_ref, o_ref):
    # x_ref: (tile_m, K*C_in)   im2col patches (bf16 or f32)
    # w_ref: (K*C_in, tile_n)   weight-normalized conv weights, C_out padded to 128*k
    # b_ref: (1, tile_n)        bias (f32, zero in the padded lanes)
    # o_ref: (tile_m, tile_n)   output tile (f32), lane-dense
    y = jnp.dot(x_ref[...], w_ref[...], preferred_element_type=jnp.float32)
    y = y + b_ref[...]

    # Mish(y) = y * tanh(softplus(y)) = y * (z^2 + 2z) / (z^2 + 2z + 2), z = e^y.
    # Clamp the exponent and pass through for large y (tanh(softplus(y)) -> 1).
    z = jnp.exp(jnp.minimum(y, 20.0))
    num = z * (z + 2.0)
    t = num * pl.reciprocal(num + 2.0, approx=True)
    t = jnp.where(y > 20.0, 1.0, t)
    o_ref[...] = (y * t).astype(o_ref.dtype)


def encoder_block_forward(x_ncl, v, g, bias, *, kernel_size, padding, stride,
                          compute_dtype=jnp.bfloat16):
    """EncoderBlock.forward: weight_norm Conv1d (stride=scale) then Mish.

    x_ncl: (N, C_in, L) float32 (PyTorch NCW layout)
    v:     (C_out, C_in, K)  weight_norm direction param
    g:     (C_out, 1, 1)     weight_norm magnitude param
    bias:  (C_out,)
    returns (N, C_out, L_out) float32
    """
    # weight_norm (dim=0): w[o] = g[o] * v[o] / ||v[o]||_F  (parameter glue in JAX)
    v32 = v.astype(jnp.float32)
    norm = jnp.sqrt(jnp.sum(v32 ** 2, axis=(1, 2), keepdims=True))
    w = g.astype(jnp.float32) * v32 / norm                     # (C_out, C_in, K)

    n, c_in, l = x_ncl.shape
    c_out = w.shape[0]
    l_pad = l + 2 * padding
    l_out = (l_pad - kernel_size) // stride + 1
    k_dim = kernel_size * c_in

    # ---- im2col: (N, C_in, L) -> (N*L_out, K*C_in), channels-last ----
    x_nlc = jnp.transpose(x_ncl, (0, 2, 1)).astype(jnp.float32)
    x_nlc = jnp.pad(x_nlc, ((0, 0), (padding, padding), (0, 0)))
    taps = [
        x_nlc[:, k:k + (l_out - 1) * stride + 1:stride, :]     # (N, L_out, C_in)
        for k in range(kernel_size)
    ]
    patches = jnp.stack(taps, axis=2).reshape(n * l_out, k_dim)  # (rows, K*C_in)

    # ---- tile sizing: big row tiles, lane-dense (multiple-of-128) output ----
    rows = n * l_out
    tile_m = min(512, _round_up(rows, 8))
    rows_pad = _round_up(rows, tile_m)
    c_out_pad = _round_up(c_out, 128)
    tile_n = math.gcd(c_out_pad, 512)

    patches = jnp.pad(patches, ((0, rows_pad - rows), (0, 0))).astype(compute_dtype)
    w_flat = jnp.transpose(w, (2, 1, 0)).reshape(k_dim, c_out)   # (K*C_in, C_out)
    w_flat = jnp.pad(w_flat, ((0, 0), (0, c_out_pad - c_out))).astype(compute_dtype)
    b_flat = jnp.pad(bias.astype(jnp.float32),
                     (0, c_out_pad - c_out)).reshape(1, c_out_pad)

    grid = (rows_pad // tile_m, c_out_pad // tile_n)
    out = pl.pallas_call(
        _encoder_block_kernel,
        out_shape=jax.ShapeDtypeStruct((rows_pad, c_out_pad), jnp.float32),
        grid_spec=pltpu.PrefetchScalarGridSpec(
            num_scalar_prefetch=0,
            grid=grid,
            in_specs=[
                pl.BlockSpec((tile_m, k_dim), lambda i, j: (i, 0)),
                pl.BlockSpec((k_dim, tile_n), lambda i, j: (0, j)),
                pl.BlockSpec((1, tile_n), lambda i, j: (0, j)),
            ],
            out_specs=pl.BlockSpec((tile_m, tile_n), lambda i, j: (i, j)),
        ),
        compiler_params=pltpu.CompilerParams(
            dimension_semantics=("parallel", "parallel")),
    )(patches, w_flat, b_flat)

    out = out[:rows, :c_out].reshape(n, l_out, c_out)
    return jnp.transpose(out, (0, 2, 1))                         # (N, C_out, L_out)


def _reference(x_ncl, v, g, bias, *, kernel_size, padding, stride):
    """Pure-JAX reference matching the PyTorch module."""
    norm = jnp.sqrt(jnp.sum(v ** 2, axis=(1, 2), keepdims=True))
    w = g * v / norm
    y = lax.conv_general_dilated(
        x_ncl, w,
        window_strides=(stride,),
        padding=[(padding, padding)],
        dimension_numbers=("NCH", "OIH", "NCH"),
    )
    y = y + bias[None, :, None]
    return y * jnp.tanh(jax.nn.softplus(y))


if __name__ == "__main__":
    # EncoderBlock(input_size=16, output_size=32, kernel_size=3, padding_size=1, scale=2)
    batch, c_in, c_out, length = 2, 16, 32, 16
    kernel_size, padding, stride = 3, 1, 2

    key = jax.random.PRNGKey(0)
    kx, kv, kg, kb = jax.random.split(key, 4)
    x = jax.random.normal(kx, (batch, c_in, length), dtype=jnp.float32)
    v = 0.1 * jax.random.normal(kv, (c_out, c_in, kernel_size), dtype=jnp.float32)
    g = 0.5 + 0.1 * jax.random.normal(kg, (c_out, 1, 1), dtype=jnp.float32)
    bias = 0.1 * jax.random.normal(kb, (c_out,), dtype=jnp.float32)

    ref = jax.block_until_ready(_reference(
        x, v, g, bias, kernel_size=kernel_size, padding=padding, stride=stride))

    # Full-precision path (f32 matmul) — tight check of the kernel math.
    out_f32 = jax.block_until_ready(encoder_block_forward(
        x, v, g, bias, kernel_size=kernel_size, padding=padding, stride=stride,
        compute_dtype=jnp.float32))
    assert out_f32.shape == ref.shape, (out_f32.shape, ref.shape)
    assert jnp.allclose(out_f32, ref, atol=5e-3, rtol=5e-3), float(
        jnp.max(jnp.abs(out_f32 - ref)))

    # Performance path (bf16 MXU inputs, f32 accumulation/epilogue).
    out_bf16 = jax.block_until_ready(encoder_block_forward(
        x, v, g, bias, kernel_size=kernel_size, padding=padding, stride=stride,
        compute_dtype=jnp.bfloat16))
    assert out_bf16.shape == ref.shape, (out_bf16.shape, ref.shape)
    assert jnp.allclose(out_bf16, ref, atol=5e-2, rtol=5e-2), float(
        jnp.max(jnp.abs(out_bf16 - ref)))

    print("KERNEL_OK")
</pallas_src>

<mosaic_0001>
module attributes {stable_mosaic.version = 11 : i64} {
  func.func @_encoder_block_kernel(%arg0: i32, %arg1: i32, %arg2: memref<16x48xf32, #tpu.memory_space<vmem>>, %arg3: memref<48x128xf32, #tpu.memory_space<vmem>>, %arg4: memref<1x128xf32, #tpu.memory_space<vmem>>, %arg5: memref<16x128xf32, #tpu.memory_space<vmem>>) attributes {dimension_semantics = [#tpu.dimension_semantics<parallel>, #tpu.dimension_semantics<parallel>], iteration_bounds = array<i64: 1, 1>, scalar_prefetch = 0 : i64, scratch_operands = 0 : i64, tpu.core_type = #tpu.core_type<tc>, window_params = [{transform_indices = @transform_0, window_bounds = array<i64: 16, 48>}, {transform_indices = @transform_1, window_bounds = array<i64: 48, 128>}, {transform_indices = @transform_2, window_bounds = array<i64: 1, 128>}, {transform_indices = @transform_3, window_bounds = array<i64: 16, 128>}]} {
    %c0 = arith.constant 0 : index
    %c0_0 = arith.constant 0 : index
    %0 = vector.load %arg2[%c0, %c0_0] : memref<16x48xf32, #tpu.memory_space<vmem>>, vector<16x48xf32>
    %c0_1 = arith.constant 0 : index
    %c0_2 = arith.constant 0 : index
    %1 = vector.load %arg3[%c0_1, %c0_2] : memref<48x128xf32, #tpu.memory_space<vmem>>, vector<48x128xf32>
    %cst = arith.constant dense<0.000000e+00> : vector<16x128xf32>
    %2 = tpu.matmul %0, %1, %cst {dimension_numbers = #tpu.dot_dimension_numbers<[1], [0], [0], [1], [0, 0, 1, 1], [], []>} : vector<16x48xf32>, vector<48x128xf32>, vector<16x128xf32> -> vector<16x128xf32>
    %c0_3 = arith.constant 0 : index
    %c0_4 = arith.constant 0 : index
    %3 = vector.load %arg4[%c0_3, %c0_4] : memref<1x128xf32, #tpu.memory_space<vmem>>, vector<1x128xf32>
    %4 = vector.broadcast %3 : vector<1x128xf32> to vector<16x128xf32>
    %5 = arith.addf %2, %4 : vector<16x128xf32>
    %cst_5 = arith.constant 2.000000e+01 : f32
    %6 = vector.broadcast %cst_5 : f32 to vector<16x128xf32>
    %7 = arith.minimumf %5, %6 : vector<16x128xf32>
    %8 = math.exp %7 : vector<16x128xf32>
    %cst_6 = arith.constant 2.000000e+00 : f32
    %9 = vector.broadcast %cst_6 : f32 to vector<16x128xf32>
    %10 = arith.addf %8, %9 : vector<16x128xf32>
    %11 = arith.mulf %8, %10 : vector<16x128xf32>
    %cst_7 = arith.constant 2.000000e+00 : f32
    %12 = vector.broadcast %cst_7 : f32 to vector<16x128xf32>
    %13 = arith.addf %11, %12 : vector<16x128xf32>
    %14 = tpu.reciprocal %13 {approx = true} : vector<16x128xf32> -> vector<16x128xf32>
    %15 = arith.mulf %11, %14 : vector<16x128xf32>
    %cst_8 = arith.constant 2.000000e+01 : f32
    %16 = vector.broadcast %cst_8 : f32 to vector<16x128xf32>
    %17 = arith.cmpf ogt, %5, %16 : vector<16x128xf32>
    %cst_9 = arith.constant 1.000000e+00 : f32
    %18 = vector.broadcast %cst_9 : f32 to vector<16x128xf32>
    %19 = arith.select %17, %18, %15 : vector<16x128xi1>, vector<16x128xf32>
    %20 = arith.mulf %5, %19 : vector<16x128xf32>
    %c0_10 = arith.constant 0 : index
    %c0_11 = arith.constant 0 : index
    %21 = vector.load %arg5[%c0_10, %c0_11] : memref<16x128xf32, #tpu.memory_space<vmem>>, vector<16x128xf32>
    tpu.vector_store %arg5[%c0_10, %c0_11], %20 {strides = array<i32>} : memref<16x128xf32, #tpu.memory_space<vmem>>, vector<16x128xf32>,
    return
  }
  func.func @transform_0(%arg0: i32, %arg1: i32) -> (i32, i32) {
    %c0_i32 = arith.constant 0 : i32
    %c0_i32_0 = arith.constant 0 : i32
    return %arg0, %c0_i32 : i32, i32
  }
  func.func @transform_1(%arg0: i32, %arg1: i32) -> (i32, i32) {
    %c0_i32 = arith.constant 0 : i32
    %c0_i32_0 = arith.constant 0 : i32
    return %c0_i32, %arg1 : i32, i32
  }
  func.func @transform_2(%arg0: i32, %arg1: i32) -> (i32, i32) {
    %c0_i32 = arith.constant 0 : i32
    %c0_i32_0 = arith.constant 0 : i32
    return %c0_i32, %arg1 : i32, i32
  }
  func.func @transform_3(%arg0: i32, %arg1: i32) -> (i32, i32) {
    %c0_i32 = arith.constant 0 : i32
    return %arg0, %arg1 : i32, i32
  }
}

</mosaic_0001>

<llo_original>
// kernel: tpu_custom_call.1
$region0: #{tpu_custom_call.1}
  #allocation0 [shape = 'u32[]', space=smem, size = 0x4, offset = 0x4, fixed_abs, tag = 'smem constant byte address 0x4 - core index']
  #allocation1 [shape = 'u32[144,128]{1,0:T(1,128)}', space=vmem, size = 0x12000, scoped, tag = 'internal scratch']
  %s0 = inlined_call_operand.hbm [shape: f32[16,48], index: 0, kind: input, shape index: {}]
  %s1 = inlined_call_operand.hbm [shape: f32[48,128], index: 1, kind: input, shape index: {}]
  %s2 = inlined_call_operand.vmem [shape: f32[1,128], index: 2, kind: input, shape index: {}]
  %s3 = inlined_call_operand.hbm [shape: f32[16,128], index: 3, kind: output, shape index: {}]
  %s4 = sld [smem:[#allocation0]]
  $region30: #{tpu_custom_call.1} parent=0
    _
  %s6 = ssub.s32 1, %s4
  %s7 = scalar_select 0, %s6, %s4
  $region1: #{tpu_custom_call.1} parent=0
    #allocation2 [shape = 'u8[8192]{0}', space=vmem, size = 0x2000, scoped, tag = 'input window, operand 0, single buffered']
    #allocation3 [shape = 's32[1]{0}', space=sflag, size = 0x4, scoped, tag = 'scoped memory for tpu_custom_call.1']
    #allocation4 [shape = 's32[1]{0}', space=sflag, size = 0x4, scoped, tag = 'scoped memory for tpu_custom_call.1']
    #allocation5 [shape = 'u8[24576]{0}', space=vmem, size = 0x6000, scoped, tag = 'input window, operand 1, single buffered']
    #allocation6 [shape = 's32[1]{0}', space=sflag, size = 0x4, scoped, tag = 'scoped memory for tpu_custom_call.1']
    #allocation7 [shape = 'u8[8192]{0}', space=vmem, size = 0x2000, scoped, tag = 'output window, operand 0, single buffered']
    %8 = vsyncpa [#allocation3], 0
    %9 = vsyncpa [#allocation6], 0
    %10 = vsyncpa [#allocation4], 0
    // Predicated region
    $region2: #{tpu_custom_call.1} parent=1 // pred_check
      _
    $region3: #{tpu_custom_call.1} parent=1 // pred_check_branch
      %12 = sbr.rel (0) target = $region5
    $region4: #{tpu_custom_call.1} parent=1 // pred_region
      %s14 = ssub.s32 256, 256
      %15 = vsyncadd [#allocation3], %s14
      %s16 = sshll.u32 [#allocation2], 4
      %s17 = int_to_ptr.vmem [resolvable:$true] %s16
      %22 = dma.hbm_to_vmem [thread:$0]  %s0, 256, %s17, [#allocation3], 128, 128, 8
    $region5: #{tpu_custom_call.1} parent=1 // pred_fallthru
      _
    // Predicated region
    $region6: #{tpu_custom_call.1} parent=1 // pred_check
      _
    $region7: #{tpu_custom_call.1} parent=1 // pred_check_branch
      %24 = sbr.rel (0) target = $region9
    $region8: #{tpu_custom_call.1} parent=1 // pred_region
      %s26 = ssub.s32 768, 768
      %27 = vsyncadd [#allocation6], %s26
      %s28 = sshll.u32 [#allocation5], 4
      %s29 = int_to_ptr.vmem [resolvable:$true] %s28
      %34 = dma.hbm_to_vmem [thread:$0]  %s1, 768, %s29, [#allocation6], 128, 128, 8
    $region9: #{tpu_custom_call.1} parent=1 // pred_fallthru
      _
    // Predicated region
    $region10: #{tpu_custom_call.1} parent=1 // pred_check
      _
    $region11: #{tpu_custom_call.1} parent=1 // pred_check_branch
      %36 = sbr.rel (0) target = $region13
    $region12: #{tpu_custom_call.1} parent=1 // pred_region
      _
    $region13: #{tpu_custom_call.1} parent=1 // pred_fallthru
      _
    // Predicated region
    $region14: #{tpu_custom_call.1} parent=1 // pred_check
      _
    $region15: #{tpu_custom_call.1} parent=1 // pred_check_branch
      %38 = sbr.rel (0) target = $region17
    $region16: #{tpu_custom_call.1} parent=1 // pred_region
      %39 = dma.done [#allocation3], 256
    $region17: #{tpu_custom_call.1} parent=1 // pred_fallthru
      _
    // Predicated region
    $region18: #{tpu_custom_call.1} parent=1 // pred_check
      _
    $region19: #{tpu_custom_call.1} parent=1 // pred_check_branch
      %41 = sbr.rel (0) target = $region21
    $region20: #{tpu_custom_call.1} parent=1 // pred_region
      %42 = dma.done [#allocation6], 768
    $region21: #{tpu_custom_call.1} parent=1 // pred_fallthru
      _
    %v43 = vld [vmem:[#allocation2] sm:$0xff]
    %v44 = vld [vmem:[#allocation2 + $0x8] sm:$0xff]
    %v45 = vld [vmem:[#allocation5] sm:$0xff]
    %v46 = vld [vmem:[#allocation5 + $0x8] sm:$0xff]
    %v47 = vld [vmem:[#allocation5 + $0x10] sm:$0xff]
    %v48 = vld [vmem:[#allocation5 + $0x18] sm:$0xff]
    %v49 = vld [vmem:[#allocation5 + $0x20] sm:$0xff]
    %v50 = vld [vmem:[#allocation5 + $0x28] sm:$0xff]
    %v51 = vld [vmem:[%s2] sm:$0x1]
    %v53 = vlaneseq
    %v54 = vshrl.u32 %v53, 7
    %v55 = vsub.s32 0, %v54
    %v56 = vrot.slane %v51, %v55
    %vm58 = vcmask 392192
    %v60 = vsel %vm58, %v43, 0
    %v63 = vsel %vm58, %v44, 0
    %65 = vmatprep.subr.mxu0 0.0
    %66 = vmatpush1.msra.mxu0 0.0
    %67 = vmatprep.subr.mxu0 0.0
    %68 = vmatpush1.msra.mxu0 0.0
    %69 = vmatprep.subr.mxu0 0.0
    %70 = vmatpush1.msra.mxu0 0.0
    %71 = vmatprep.subr.mxu0 0.0
    %72 = vmatpush1.msra.mxu0 0.0
    %73 = vmatprep.subr.mxu0 0.0
    %74 = vmatpush1.msra.mxu0 0.0
    %75 = vmatprep.subr.mxu0 0.0
    %76 = vmatpush1.msra.mxu0 0.0
    %77 = vmatprep.subr.mxu0 0.0
    %78 = vmatpush1.msra.mxu0 0.0
    %79 = vmatprep.subr.mxu0 0.0
    %80 = vmatpush1.msra.mxu0 0.0
    %81 = vmatprep.subr.mxu0 0.0
    %82 = vmatpush1.msra.mxu0 0.0
    %83 = vmatprep.subr.mxu0 0.0
    %84 = vmatpush1.msra.mxu0 0.0
    %85 = vmatprep.subr.mxu0 0.0
    %86 = vmatpush1.msra.mxu0 %v50
    %87 = vmatprep.subr.mxu0 0.0
    %88 = vmatpush1.msra.mxu0 %v49
    %89 = vmatprep.subr.mxu0 0.0
    %90 = vmatpush1.msra.mxu0 %v48
    %91 = vmatprep.subr.mxu0 0.0
    %92 = vmatpush1.msra.mxu0 %v47
    %93 = vmatprep.subr.mxu0 0.0
    %94 = vmatpush1.msra.mxu0 %v46
    %95 = vmatprep.subr.mxu0 0.0
    %96 = vmatpush1.msra.mxu0 %v45
    %97 = vmatprep.subr.mxu0 0.0
    %98 = vmatpush2.msra.mxu0 0.0
    %99 = vmatprep.subr.mxu0 0.0
    %100 = vmatpush2.msra.mxu0 0.0
    %101 = vmatprep.subr.mxu0 0.0
    %102 = vmatpush2.msra.mxu0 0.0
    %103 = vmatprep.subr.mxu0 0.0
    %104 = vmatpush2.msra.mxu0 0.0
    %105 = vmatprep.subr.mxu0 0.0
    %106 = vmatpush2.msra.mxu0 0.0
    %107 = vmatprep.subr.mxu0 0.0
    %108 = vmatpush2.msra.mxu0 0.0
    %109 = vmatprep.subr.mxu0 0.0
    %110 = vmatpush2.msra.mxu0 0.0
    %111 = vmatprep.subr.mxu0 0.0
    %112 = vmatpush2.msra.mxu0 0.0
    %113 = vmatprep.subr.mxu0 0.0
    %114 = vmatpush2.msra.mxu0 0.0
    %115 = vmatprep.subr.mxu0 0.0
    %116 = vmatpush2.msra.mxu0 0.0
    %117 = vmatprep.subr.mxu0 0.0
    %118 = vmatpush2.msra.mxu0 0.0
    %119 = vmatprep.subr.mxu0 0.0
    %120 = vmatpush2.msra.mxu0 0.0
    %121 = vmatprep.subr.mxu0 0.0
    %122 = vmatpush2.msra.mxu0 0.0
    %123 = vmatprep.subr.mxu0 0.0
    %124 = vmatpush2.msra.mxu0 0.0
    %125 = vmatprep.subr.mxu0 0.0
    %126 = vmatpush2.msra.mxu0 0.0
    %127 = vmatprep.subr.mxu0 0.0
    %128 = vmatpush2.msra.mxu0 0.0
    %129 = vmatprep.mubr.f32.mxu0 0.0
    %130 = vmatmul.mubr.f32.gmra.mxu0 %v60
    %v131 = vpop.f32.mrf.mxu0
    %v132 = vadd.f32 %v56, %v131
    %v133 = vpop.f32.mrf.mxu0
    %134 = vmatprep.mubr.f32.mxu0 0.0
    %135 = vmatmul.mubr.f32.gmra.mxu0 %v63
    %v136 = vpop.f32.mrf.mxu0
    %v137 = vadd.f32 %v56, %v136
    %v138 = vpop.f32.mrf.mxu0
    %139 = vdwg.mxu0
    %v140 = vmin.f32 %v132, 20.0
    %v141 = vmin.f32 %v137, 20.0
    %v142 = vmul.f32 %v140, 1.442695
    %v143 = vpow.pop %v142
    %v144 = vmul.f32 %v141, 1.442695
    %v145 = vpow.pop %v144
    %v146 = vadd.f32 %v143, 2.0
    %v147 = vadd.f32 %v145, 2.0
    %v148 = vmul.f32 %v143, %v146
    %v149 = vmul.f32 %v145, %v147
    %v150 = vadd.f32 %v148, 2.0
    %v151 = vadd.f32 %v149, 2.0
    %v152 = vrcp.pop %v150
    %v153 = vrcp.pop %v151
    %v154 = vmul.f32 %v148, %v152
    %v155 = vmul.f32 %v149, %v153
    %vm156 = vcmp.gt.f32.partialorder %v132, 20.0
    %vm157 = vcmp.gt.f32.partialorder %v137, 20.0
    %v158 = vsel %vm156, 1.0, %v154
    %v159 = vsel %vm157, 1.0, %v155
    %v160 = vmul.f32 %v132, %v158
    %v161 = vmul.f32 %v137, %v159
    %162 = vst [vmem:[#allocation7] sm:$0xff] %v160
    %163 = vst [vmem:[#allocation7 + $0x8] sm:$0xff] %v161
    // Predicated region
    $region22: #{tpu_custom_call.1} parent=1 // pred_check
      _
    $region23: #{tpu_custom_call.1} parent=1 // pred_check_branch
      %165 = sbr.rel (0) target = $region25
    $region24: #{tpu_custom_call.1} parent=1 // pred_region
      %s167 = ssub.s32 256, 256
      %168 = vsyncadd [#allocation4], %s167
      %s169 = sshll.u32 [#allocation7], 4
      %s170 = int_to_ptr.vmem [resolvable:$true] %s169
      %175 = dma.vmem_to_hbm [thread:$0]  %s170, 256, %s3, [#allocation4], 128, 128, 8
    $region25: #{tpu_custom_call.1} parent=1 // pred_fallthru
      _
    // Predicated region
    $region26: #{tpu_custom_call.1} parent=1 // pred_check
      _
    $region27: #{tpu_custom_call.1} parent=1 // pred_check_branch
      %177 = sbr.rel (0) target = $region29
    $region28: #{tpu_custom_call.1} parent=1 // pred_region
      %178 = dma.done [#allocation4], 256
    $region29: #{tpu_custom_call.1} parent=1 // pred_fallthru
      _
    %179 = vsyncpa [#allocation3], 1
    %180 = vsyncpa [#allocation6], 1
    %181 = vsyncpa [#allocation4], 1

</llo_original>
